<compile_context>
chip_gen: v6e
topology: v6e:2x2x1
jax: 0.10.0
libtpu: 0.0.40
codegen_flags: <defaults>
</compile_context>

<pallas_src>
import jax
import jax.numpy as jnp
from jax.experimental import pallas as pl
from jax.experimental.pallas import tpu as pltpu


def _round_up(x, m):
    return (x + m - 1) // m * m


def _gelu_kernel(x_ref, o_ref):
    # Upcast to f32 for the transcendental; tanh runs on the EUP so it is
    # essentially free next to the HBM-bound loads/stores.
    x = x_ref[...].astype(jnp.float32)
    c = jnp.float32(0.7978845608028654)  # sqrt(2/pi)
    # Horner form of x + 0.044715 * x^3  ->  x * (1 + 0.044715 * x^2)
    inner = c * x * (1.0 + 0.044715 * x * x)
    y = 0.5 * x * (1.0 + jnp.tanh(inner))
    o_ref[...] = y.astype(o_ref.dtype)


def _num_tensorcores():
    """Best-effort TensorCore-per-chip count (v5e/v6e: 1, v7x: 2)."""
    try:
        dev = jax.devices()[0]
        for attr in ("num_cores", "core_count"):
            v = getattr(dev, attr, None)
            if v:
                return int(v)
        kind = str(getattr(dev, "device_kind", "")).lower()
        if "v7" in kind:
            return 2
    except Exception:
        pass
    try:
        info = pltpu.get_tpu_info()
        for attr in ("num_tensorcores", "tensorcore_count", "num_cores"):
            v = getattr(info, attr, None)
            if v:
                return int(v)
    except Exception:
        pass
    return 1


def _vmem_limit_bytes(block_bytes):
    """Scoped-VMEM budget: 4x block (double-buffered in+out) + headroom,
    hard-capped so it is safe on v7x's 64 MiB per-TC VMEM."""
    cap = 128 << 20
    try:
        info = pltpu.get_tpu_info()
        cap = int(getattr(info, "vmem_capacity_bytes", cap))
    except Exception:
        pass
    need = 4 * block_bytes + (8 << 20)
    return int(min(max(need, 32 << 20), cap // 2, 64 << 20))


def _pick_lanes(n, max_lanes):
    """Largest multiple of 128 that divides n (n must be a multiple of 128)."""
    units = n // 128
    d = min(max_lanes // 128, units)
    while d > 1 and units % d != 0:
        d -= 1
    return d * 128


def gelu_pallas(x, *, max_lanes=2048, donate=False):
    orig_shape = x.shape
    n = x.size
    if n == 0:
        return x

    itemsize = jnp.dtype(x.dtype).itemsize
    sub = max(8, 32 // itemsize)          # sublane multiple: 8 f32 / 16 bf16 / 32 i8

    # ---- lane-dense 2-D slab; pad ONLY for ragged flat sizes ----
    flat = x.reshape(-1)
    if n % 128 == 0:
        padded = n                        # no pad, reshape is a free metadata op
    else:
        padded = _round_up(n, 128)        # ragged tail: pad by < 128 elements
        flat = jnp.pad(flat, (0, padded - n))
    lanes = _pick_lanes(padded, max_lanes)
    x2 = flat.reshape(-1, lanes)
    rows = x2.shape[0]

    # ---- tile sizing: ~4 MiB cap, sublane-rounded ----
    block_bytes_cap = 4 << 20
    row_bytes = lanes * itemsize
    block_rows = max(sub, (block_bytes_cap // row_bytes) // sub * sub)
    block_rows = min(block_rows, rows)

    num_tc = _num_tensorcores()
    if num_tc > 1 and rows > sub:
        # v7x: aim for an even number of grid steps (>= 8 when big enough) so
        # both TensorCores get a balanced share of the HBM stream.
        max_steps = max(1, rows // sub)
        target = min(8, max_steps)
        if target > 1 and target % 2 == 1:
            target -= 1
        steps = pl.cdiv(rows, block_rows)
        if steps < target:
            block_rows = min(rows, _round_up(pl.cdiv(rows, target), sub))
    # else: single-TC chip -> grid is a sequential loop, never force a split.

    # Prefer a block_rows that divides rows (avoids a masked ragged last
    # block -- matters most on v5e's single vector-store slot).
    if rows % block_rows != 0 and block_rows > sub and rows % sub == 0:
        cand = block_rows
        while cand >= max(sub, block_rows // 2):
            if rows % cand == 0:
                block_rows = cand
                break
            cand -= sub

    grid = (pl.cdiv(rows, block_rows),)
    block_bytes = block_rows * lanes * itemsize
    vmem_limit = _vmem_limit_bytes(block_bytes)

    out = pl.pallas_call(
        _gelu_kernel,
        out_shape=jax.ShapeDtypeStruct((rows, lanes), x.dtype),
        grid_spec=pltpu.PrefetchScalarGridSpec(
            num_scalar_prefetch=0,
            grid=grid,
            in_specs=[pl.BlockSpec((block_rows, lanes), lambda i: (i, 0))],
            out_specs=pl.BlockSpec((block_rows, lanes), lambda i: (i, 0)),
        ),
        compiler_params=pltpu.CompilerParams(
            dimension_semantics=("parallel",),
            vmem_limit_bytes=int(vmem_limit),
        ),
        input_output_aliases=({0: 0} if donate else {}),
    )(x2)

    out_flat = out.reshape(-1)
    if padded != n:
        out_flat = out_flat[:n]
    return out_flat.reshape(orig_shape)


def gelu_reference(x):
    xf = x.astype(jnp.float32)
    c = jnp.sqrt(2.0 / jnp.pi)
    return (0.5 * xf * (1.0 + jnp.tanh(c * (xf + 0.044715 * xf ** 3)))).astype(x.dtype)


if __name__ == "__main__":
    key = jax.random.PRNGKey(0)
    # small shapes consistent with a typical GELU call: (batch, seq, hidden)
    x = jax.random.normal(key, (2, 8, 32), dtype=jnp.float32)

    y = gelu_pallas(x)
    y = jax.block_until_ready(y)

    y_ref = gelu_reference(x)
    assert y.shape == x.shape and y.dtype == x.dtype
    assert jnp.allclose(y, y_ref, atol=1e-5, rtol=1e-5)

    # ragged flat size (not a multiple of 128) -> minimal-pad path
    x2 = jax.random.normal(jax.random.PRNGKey(1), (3, 5, 30), dtype=jnp.float32)
    y2 = jax.block_until_ready(gelu_pallas(x2))
    assert jnp.allclose(y2, gelu_reference(x2), atol=1e-5, rtol=1e-5)

    # bf16 path (16-row sublane packing) + input donation
    x3 = jax.random.normal(jax.random.PRNGKey(2), (2, 16, 128), dtype=jnp.bfloat16)
    y3 = jax.block_until_ready(gelu_pallas(x3, donate=True))
    assert y3.dtype == jnp.bfloat16
    assert jnp.allclose(y3.astype(jnp.float32),
                        gelu_reference(x3).astype(jnp.float32),
                        atol=2e-2, rtol=2e-2)

    print("KERNEL_OK")
</pallas_src>

<mosaic_0001>
module attributes {stable_mosaic.version = 11 : i64} {
  func.func @_gelu_kernel(%arg0: i32, %arg1: memref<1x512xf32, #tpu.memory_space<vmem>>, %arg2: memref<1x512xf32, #tpu.memory_space<vmem>>) attributes {dimension_semantics = [#tpu.dimension_semantics<parallel>], iteration_bounds = array<i64: 1>, scalar_prefetch = 0 : i64, scratch_operands = 0 : i64, tpu.core_type = #tpu.core_type<tc>, window_params = [{transform_indices = @transform_0, window_bounds = array<i64: 1, 512>}, {transform_indices = @transform_1, window_bounds = array<i64: 1, 512>}]} {
    %c0 = arith.constant 0 : index
    %c0_0 = arith.constant 0 : index
    %0 = vector.load %arg1[%c0, %c0_0] : memref<1x512xf32, #tpu.memory_space<vmem>>, vector<1x512xf32>
    %cst = arith.constant 0.797884583 : f32
    %1 = vector.broadcast %cst : f32 to vector<1x512xf32>
    %2 = arith.mulf %1, %0 : vector<1x512xf32>
    %cst_1 = arith.constant 4.471500e-02 : f32
    %3 = vector.broadcast %cst_1 : f32 to vector<1x512xf32>
    %4 = arith.mulf %3, %0 : vector<1x512xf32>
    %5 = arith.mulf %4, %0 : vector<1x512xf32>
    %cst_2 = arith.constant 1.000000e+00 : f32
    %6 = vector.broadcast %cst_2 : f32 to vector<1x512xf32>
    %7 = arith.addf %6, %5 : vector<1x512xf32>
    %8 = arith.mulf %2, %7 : vector<1x512xf32>
    %cst_3 = arith.constant 5.000000e-01 : f32
    %9 = vector.broadcast %cst_3 : f32 to vector<1x512xf32>
    %10 = arith.mulf %9, %0 : vector<1x512xf32>
    %11 = math.tanh %8 : vector<1x512xf32>
    %cst_4 = arith.constant 1.000000e+00 : f32
    %12 = vector.broadcast %cst_4 : f32 to vector<1x512xf32>
    %13 = arith.addf %12, %11 : vector<1x512xf32>
    %14 = arith.mulf %10, %13 : vector<1x512xf32>
    %c0_5 = arith.constant 0 : index
    %c0_6 = arith.constant 0 : index
    %15 = vector.load %arg2[%c0_5, %c0_6] : memref<1x512xf32, #tpu.memory_space<vmem>>, vector<1x512xf32>
    tpu.vector_store %arg2[%c0_5, %c0_6], %14 {strides = array<i32>} : memref<1x512xf32, #tpu.memory_space<vmem>>, vector<1x512xf32>,
    return
  }
  func.func @transform_0(%arg0: i32) -> (i32, i32) {
    %c0_i32 = arith.constant 0 : i32
    %c0_i32_0 = arith.constant 0 : i32
    return %arg0, %c0_i32 : i32, i32
  }
  func.func @transform_1(%arg0: i32) -> (i32, i32) {
    %c0_i32 = arith.constant 0 : i32
    %c0_i32_0 = arith.constant 0 : i32
    return %arg0, %c0_i32 : i32, i32
  }
}

</mosaic_0001>

<llo_original>
// kernel: tpu_custom_call.1
$region0: #{tpu_custom_call.1}
  #allocation0 [shape = 'u32[]', space=smem, size = 0x4, offset = 0x4, fixed_abs, tag = 'smem constant byte address 0x4 - core index']
  #allocation1 [shape = 'u32[144,128]{1,0:T(1,128)}', space=vmem, size = 0x12000, scoped, tag = 'internal scratch']
  %s0 = inlined_call_operand.hbm [shape: f32[1,512], index: 0, kind: input, shape index: {}]
  %s1 = inlined_call_operand.hbm [shape: f32[1,512], index: 1, kind: output, shape index: {}]
  %s2 = sld [smem:[#allocation0]]
  $region18: #{tpu_custom_call.1} parent=0
    _
  %s4 = ssub.s32 1, %s2
  %s5 = scalar_select 0, %s4, %s2
  $region1: #{tpu_custom_call.1} parent=0
    #allocation2 [shape = 'u8[2048]{0}', space=vmem, size = 0x800, scoped, tag = 'input window, operand 0, single buffered']
    #allocation3 [shape = 's32[1]{0}', space=sflag, size = 0x4, scoped, tag = 'scoped memory for tpu_custom_call.1']
    #allocation4 [shape = 's32[1]{0}', space=sflag, size = 0x4, scoped, tag = 'scoped memory for tpu_custom_call.1']
    #allocation5 [shape = 'u8[2048]{0}', space=vmem, size = 0x800, scoped, tag = 'output window, operand 0, single buffered']
    %6 = vsyncpa [#allocation3], 0
    %7 = vsyncpa [#allocation4], 0
    // Predicated region
    $region2: #{tpu_custom_call.1} parent=1 // pred_check
      _
    $region3: #{tpu_custom_call.1} parent=1 // pred_check_branch
      %9 = sbr.rel (0) target = $region5
    $region4: #{tpu_custom_call.1} parent=1 // pred_region
      %s11 = ssub.s32 64, 64
      %12 = vsyncadd [#allocation3], %s11
      %s14 = sshll.u32 [#allocation2], 4
      %s15 = int_to_ptr.vmem [resolvable:$true] %s14
      %17 = dma.hbm_to_vmem [thread:$0]  %s0, 64, %s15, [#allocation3]
    $region5: #{tpu_custom_call.1} parent=1 // pred_fallthru
      _
    // Predicated region
    $region6: #{tpu_custom_call.1} parent=1 // pred_check
      _
    $region7: #{tpu_custom_call.1} parent=1 // pred_check_branch
      %19 = sbr.rel (0) target = $region9
    $region8: #{tpu_custom_call.1} parent=1 // pred_region
      %20 = dma.done [#allocation3], 64
    $region9: #{tpu_custom_call.1} parent=1 // pred_fallthru
      _
    %v21 = vld [vmem:[#allocation2] sm:$0xf]
    %v22 = vmul.f32 %v21, 0.7978846
    %v23 = vmul.f32 %v21, 0.044715
    %v24 = vmul.f32 %v23, %v21
    %v25 = vadd.f32 %v24, 1.0
    %v26 = vmul.f32 %v22, %v25
    %v27 = vmul.f32 %v21, 0.5
    %v28 = vtanh.pop %v26
    %v29 = vadd.f32 %v28, 1.0
    %v30 = vmul.f32 %v27, %v29
    %v31 = vlaneseq
    %vm32 = vcmp.ge.s32.totalorder %v31, 0
    %vm33 = vcmp.lt.s32.totalorder %v31, 512
    %vm34 = vmand %vm32, %vm33
    %35 = vst.msk [vmem:[#allocation5] sm:$0xf] %vm34, %v30
    // Predicated region
    $region10: #{tpu_custom_call.1} parent=1 // pred_check
      _
    $region11: #{tpu_custom_call.1} parent=1 // pred_check_branch
      %37 = sbr.rel (0) target = $region13
    $region12: #{tpu_custom_call.1} parent=1 // pred_region
      %s39 = ssub.s32 64, 64
      %40 = vsyncadd [#allocation4], %s39
      %s42 = sshll.u32 [#allocation5], 4
      %s43 = int_to_ptr.vmem [resolvable:$true] %s42
      %45 = dma.vmem_to_hbm [thread:$0]  %s43, 64, %s1, [#allocation4]
    $region13: #{tpu_custom_call.1} parent=1 // pred_fallthru
      _
    // Predicated region
    $region14: #{tpu_custom_call.1} parent=1 // pred_check
      _
    $region15: #{tpu_custom_call.1} parent=1 // pred_check_branch
      %47 = sbr.rel (0) target = $region17
    $region16: #{tpu_custom_call.1} parent=1 // pred_region
      %48 = dma.done [#allocation4], 64
    $region17: #{tpu_custom_call.1} parent=1 // pred_fallthru
      _
    %49 = vsyncpa [#allocation3], 1
    %50 = vsyncpa [#allocation4], 1

</llo_original>
